<compile_context>
chip_gen: v7x
topology: tpu7x:2x2x1
jax: 0.10.0
libtpu: 0.0.40
codegen_flags: <defaults>
</compile_context>

<pallas_src>
import functools

import jax
import jax.numpy as jnp
import numpy as np
from jax import lax
from jax.experimental import pallas as pl
from jax.experimental.pallas import tpu as pltpu

_LANE = 128   # lane width
_HALO = 128   # halo block width (lane-aligned); requires 2*dilation <= 128


def _leaky_relu(x, slope=0.2):
    return jnp.where(x > 0, x, slope * x)


def residual_stack_kernel(a_ref, h_ref, w3_ref, b3_ref, w1_ref, b1_ref,
                          ws_ref, bs_ref, o_ref, *, dilation, compute_dtype):
    """One (batch, time-tile) grid step.

    a_ref : (1, C, TT)    main window   xp[n, :, t*TT : (t+1)*TT]
    h_ref : (1, C, 128)   halo window   xp[n, :, (t+1)*TT : (t+1)*TT + 128]
    w3_ref: (3, C, C)     dilated k=3 conv weights, [tap, c_out, c_in]
    b3_ref: (C, 1)
    w1_ref: (C, C)        block k=1 conv weights, [c_out, c_in]
    b1_ref: (C, 1)
    ws_ref: (C, C)        shortcut k=1 conv weights, [c_out, c_in]
    bs_ref: (C, 1)
    o_ref : (1, C, TT)
    """
    d = dilation
    tt = a_ref.shape[2]
    cd = compute_dtype

    a = a_ref[0]                                    # (C, TT)    f32
    h = h_ref[0]                                    # (C, 128)   f32
    # Lane-aligned concat gives the full (C, TT + 128) padded window.
    w = jnp.concatenate([a, h], axis=1)

    # Raw shifted slabs.  LeakyReLU commutes with reflection padding
    # (monotone, elementwise), so activating the padded slabs is exact.
    x_c = w[:, d:d + tt]                            # center slab == raw input
    x_2 = w[:, 2 * d:2 * d + tt]

    y0 = _leaky_relu(a).astype(cd)                  # tap 0
    y1 = _leaky_relu(x_c).astype(cd)                # tap 1
    y2 = _leaky_relu(x_2).astype(cd)                # tap 2

    # Dilated k=3 conv == three shifted MXU matmuls, f32 accumulation.
    # TODO(synk): on v7x, packing the 3 taps into one (C, 3C) x (3C, TT)
    # matmul would fill the 256-deep MXU better when C <= 128.
    conv3 = (
        jnp.dot(w3_ref[0], y0, preferred_element_type=jnp.float32)
        + jnp.dot(w3_ref[1], y1, preferred_element_type=jnp.float32)
        + jnp.dot(w3_ref[2], y2, preferred_element_type=jnp.float32)
        + b3_ref[...]
    )                                               # (C, TT) f32

    z = _leaky_relu(conv3).astype(cd)
    out = jnp.dot(w1_ref[...], z, preferred_element_type=jnp.float32) + b1_ref[...]
    # Shortcut 1x1 conv on the raw input, added straight into the block output
    # (no extra full-tile temporary kept live).
    out = out + jnp.dot(ws_ref[...], x_c.astype(cd),
                        preferred_element_type=jnp.float32) + bs_ref[...]

    o_ref[0] = out.astype(o_ref.dtype)


def _weight_norm(v, g):
    """PyTorch weight_norm (dim=0): w[o] = g[o] * v[o] / ||v[o]||_2."""
    norm = jnp.sqrt(jnp.sum(v * v, axis=tuple(range(1, v.ndim)), keepdims=True))
    return v * (g.reshape((-1,) + (1,) * (v.ndim - 1)) / norm)


def init_params(key, size):
    """Deterministic synthetic parameters matching residual_stack(size, dilation)."""
    ks = jax.random.split(key, 9)
    C = size
    v3 = jax.random.normal(ks[0], (C, C, 3), jnp.float32) * 0.3
    g3 = 1.0 + 0.1 * jax.random.normal(ks[1], (C,), jnp.float32)
    b3 = 0.1 * jax.random.normal(ks[2], (C,), jnp.float32)
    v1 = jax.random.normal(ks[3], (C, C, 1), jnp.float32) * 0.3
    g1 = 1.0 + 0.1 * jax.random.normal(ks[4], (C,), jnp.float32)
    b1 = 0.1 * jax.random.normal(ks[5], (C,), jnp.float32)
    vs = jax.random.normal(ks[6], (C, C, 1), jnp.float32) * 0.3
    gs = 1.0 + 0.1 * jax.random.normal(ks[7], (C,), jnp.float32)
    bs = 0.1 * jax.random.normal(ks[8], (C,), jnp.float32)
    return dict(v3=v3, g3=g3, b3=b3, v1=v1, g1=g1, b1=b1, vs=vs, gs=gs, bs=bs)


def _vmem_limits():
    """Return (scoped-vmem limit, working-set budget used to size the time tile)."""
    cap = 64 * 1024 * 1024            # conservative default (v7x per-TensorCore)
    try:
        cap = int(getattr(pltpu.get_tpu_info(), "vmem_capacity_bytes", cap))
    except Exception:
        pass
    limit = max(32 * 1024 * 1024, min(cap - 16 * 1024 * 1024, 96 * 1024 * 1024))
    return limit, limit // 3


def _pick_time_tile(C, T, budget_bytes):
    # ~12 live (C, TT) f32-equivalent slabs: double-buffered input/output
    # blocks plus in-kernel temporaries (window, taps, conv3, z, out).
    per_col = 12 * C * 4
    tt = (budget_bytes // per_col) // _LANE * _LANE
    t_cap = pl.cdiv(T, _LANE) * _LANE      # never bigger than (lane-padded) T
    return int(max(_LANE, min(tt, t_cap, 8192)))


@functools.partial(jax.jit, static_argnames=("dilation", "compute_dtype", "time_tile"))
def residual_stack_forward(x, params, *, dilation, compute_dtype=jnp.bfloat16,
                           time_tile=None):
    """x: (N, C, T) float32 (PyTorch NCT layout). Returns (N, C, T)."""
    N, C, T = x.shape
    d = int(dilation)
    assert 1 <= d < T, "reflection pad requires dilation < T"
    assert 2 * d <= _HALO, "kernel assumes 2*dilation <= 128"
    # TODO(synk): support 2*dilation > 128 by widening the halo block.

    vmem_limit, vmem_budget = _vmem_limits()
    TT = int(time_tile) if time_tile is not None else _pick_time_tile(C, T, vmem_budget)
    assert TT % _LANE == 0 and TT >= _LANE
    nT = pl.cdiv(T, TT)
    Tt = nT * TT

    # Effective (weight-normalized) conv weights — tiny parameter glue in JAX.
    w3 = _weight_norm(params["v3"], params["g3"])            # (C_out, C_in, 3)
    w1 = _weight_norm(params["v1"], params["g1"])            # (C_out, C_in, 1)
    ws = _weight_norm(params["vs"], params["gs"])            # (C_out, C_in, 1)

    w3_k = jnp.transpose(w3, (2, 0, 1)).astype(compute_dtype)   # (3, C_out, C_in)
    w1_k = w1[:, :, 0].astype(compute_dtype)                    # (C_out, C_in)
    ws_k = ws[:, :, 0].astype(compute_dtype)                    # (C_out, C_in)
    b3_k = params["b3"].reshape(C, 1).astype(jnp.float32)
    b1_k = params["b1"].reshape(C, 1).astype(jnp.float32)
    bs_k = params["bs"].reshape(C, 1).astype(jnp.float32)

    # Stay in NCT (no transposes).  Reflection-pad along time, then zero-pad
    # on the right up to nT*TT + HALO so every (main, halo) block is in-bounds.
    # This pad is the single remaining wrapper-side HBM pass.
    xp = jnp.pad(x, ((0, 0), (0, 0), (d, d)), mode="reflect")
    pad_right = Tt + _HALO - (T + 2 * d)
    xp = jnp.pad(xp, ((0, 0), (0, 0), (0, pad_right)))          # (N, C, Tt + 128)

    tt_blocks = TT // _HALO
    kernel = functools.partial(residual_stack_kernel, dilation=d,
                               compute_dtype=compute_dtype)

    out_padded = pl.pallas_call(
        kernel,
        out_shape=jax.ShapeDtypeStruct((N, C, Tt), x.dtype),
        grid=(N, nT),
        in_specs=[
            # main (C, TT) window of the padded input for this time tile
            pl.BlockSpec((1, C, TT), lambda n, t: (n, 0, t)),
            # 128-wide halo: the next 128 cols (covers the 2*d conv overhang)
            pl.BlockSpec((1, C, _HALO), lambda n, t: (n, 0, (t + 1) * tt_blocks)),
            # weights / biases: constant index maps keep them resident
            pl.BlockSpec((3, C, C), lambda n, t: (0, 0, 0)),
            pl.BlockSpec((C, 1), lambda n, t: (0, 0)),
            pl.BlockSpec((C, C), lambda n, t: (0, 0)),
            pl.BlockSpec((C, 1), lambda n, t: (0, 0)),
            pl.BlockSpec((C, C), lambda n, t: (0, 0)),
            pl.BlockSpec((C, 1), lambda n, t: (0, 0)),
        ],
        out_specs=pl.BlockSpec((1, C, TT), lambda n, t: (n, 0, t)),
        compiler_params=pltpu.CompilerParams(
            dimension_semantics=("parallel", "parallel"),
            vmem_limit_bytes=vmem_limit),
    )(xp, xp, w3_k, b3_k, w1_k, b1_k, ws_k, bs_k)

    return out_padded[:, :, :T]


def residual_stack_reference(x, params, dilation):
    """Pure-JAX reference using lax.conv_general_dilated (mirrors PyTorch)."""
    d = dilation
    w3 = _weight_norm(params["v3"], params["g3"])
    w1 = _weight_norm(params["v1"], params["g1"])
    ws = _weight_norm(params["vs"], params["gs"])

    dn = ("NCH", "OIH", "NCH")
    y = _leaky_relu(x)
    y = jnp.pad(y, ((0, 0), (0, 0), (d, d)), mode="reflect")
    c3 = lax.conv_general_dilated(y, w3, window_strides=(1,), padding="VALID",
                                  rhs_dilation=(d,), dimension_numbers=dn)
    c3 = c3 + params["b3"][None, :, None]
    z = _leaky_relu(c3)
    c1 = lax.conv_general_dilated(z, w1, window_strides=(1,), padding="VALID",
                                  dimension_numbers=dn) + params["b1"][None, :, None]
    sc = lax.conv_general_dilated(x, ws, window_strides=(1,), padding="VALID",
                                  dimension_numbers=dn) + params["bs"][None, :, None]
    return c1 + sc


if __name__ == "__main__":
    N, C, T = 2, 8, 16
    dilation = 2

    key = jax.random.PRNGKey(0)
    kx, kp = jax.random.split(key)
    x = jax.random.normal(kx, (N, C, T), jnp.float32)
    params = init_params(kp, C)

    ref = jax.block_until_ready(residual_stack_reference(x, params, dilation))

    # Exact path (f32 MXU operands) — tight check of pad/conv/activation math.
    out_f32 = jax.block_until_ready(
        residual_stack_forward(x, params, dilation=dilation,
                               compute_dtype=jnp.float32))
    assert out_f32.shape == (N, C, T)
    np.testing.assert_allclose(np.asarray(out_f32), np.asarray(ref),
                               rtol=1e-5, atol=1e-5)

    # Default fast path: bf16 MXU operands, f32 accumulation.
    out_bf16 = jax.block_until_ready(
        residual_stack_forward(x, params, dilation=dilation))
    assert out_bf16.shape == (N, C, T)
    np.testing.assert_allclose(np.asarray(out_bf16), np.asarray(ref),
                               rtol=1e-1, atol=1e-1)

    print("KERNEL_OK")
</pallas_src>

<mosaic_0001>
module attributes {stable_mosaic.version = 11 : i64} {
  func.func @residual_stack_kernel(%arg0: i32, %arg1: i32, %arg2: memref<1x8x128xf32, #tpu.memory_space<vmem>>, %arg3: memref<1x8x128xf32, #tpu.memory_space<vmem>>, %arg4: memref<3x8x8xf32, #tpu.memory_space<vmem>>, %arg5: memref<8x1xf32, #tpu.memory_space<vmem>>, %arg6: memref<8x8xf32, #tpu.memory_space<vmem>>, %arg7: memref<8x1xf32, #tpu.memory_space<vmem>>, %arg8: memref<8x8xf32, #tpu.memory_space<vmem>>, %arg9: memref<8x1xf32, #tpu.memory_space<vmem>>, %arg10: memref<1x8x128xf32, #tpu.memory_space<vmem>>) attributes {dimension_semantics = [#tpu.dimension_semantics<parallel>, #tpu.dimension_semantics<parallel>], iteration_bounds = array<i64: 2, 1>, scalar_prefetch = 0 : i64, scratch_operands = 0 : i64, tpu.core_type = #tpu.core_type<tc>, window_params = [{transform_indices = @transform_0, window_bounds = array<i64: 1, 8, 128>}, {transform_indices = @transform_1, window_bounds = array<i64: 1, 8, 128>}, {pipeline_mode = #tpu.pipeline_mode<synchronous>, transform_indices = @transform_2, window_bounds = array<i64: 3, 8, 8>}, {pipeline_mode = #tpu.pipeline_mode<synchronous>, transform_indices = @transform_3, window_bounds = array<i64: 8, 1>}, {pipeline_mode = #tpu.pipeline_mode<synchronous>, transform_indices = @transform_4, window_bounds = array<i64: 8, 8>}, {pipeline_mode = #tpu.pipeline_mode<synchronous>, transform_indices = @transform_5, window_bounds = array<i64: 8, 1>}, {pipeline_mode = #tpu.pipeline_mode<synchronous>, transform_indices = @transform_6, window_bounds = array<i64: 8, 8>}, {pipeline_mode = #tpu.pipeline_mode<synchronous>, transform_indices = @transform_7, window_bounds = array<i64: 8, 1>}, {transform_indices = @transform_8, window_bounds = array<i64: 1, 8, 128>}]} {
    %c0 = arith.constant 0 : index
    %c0_0 = arith.constant 0 : index
    %c0_1 = arith.constant 0 : index
    %0 = vector.load %arg2[%c0, %c0_0, %c0_1] : memref<1x8x128xf32, #tpu.memory_space<vmem>>, vector<1x8x128xf32>
    %1 = vector.shape_cast %0 : vector<1x8x128xf32> to vector<8x128xf32>
    %c0_2 = arith.constant 0 : index
    %c0_3 = arith.constant 0 : index
    %c0_4 = arith.constant 0 : index
    %2 = vector.load %arg3[%c0_2, %c0_3, %c0_4] : memref<1x8x128xf32, #tpu.memory_space<vmem>>, vector<1x8x128xf32>
    %3 = vector.shape_cast %2 : vector<1x8x128xf32> to vector<8x128xf32>
    %4 = tpu.concatenate %1, %3 in 1 : vector<8x128xf32>, vector<8x128xf32> -> vector<8x256xf32>
    %5 = vector.extract_strided_slice %4 {offsets = [0, 2], sizes = [8, 128], strides = [1, 1]} : vector<8x256xf32> to vector<8x128xf32>
    %6 = vector.extract_strided_slice %4 {offsets = [0, 4], sizes = [8, 128], strides = [1, 1]} : vector<8x256xf32> to vector<8x128xf32>
    %cst = arith.constant 0.000000e+00 : f32
    %7 = vector.broadcast %cst : f32 to vector<8x128xf32>
    %8 = arith.cmpf ogt, %1, %7 : vector<8x128xf32>
    %cst_5 = arith.constant 2.000000e-01 : f32
    %9 = vector.broadcast %cst_5 : f32 to vector<8x128xf32>
    %10 = arith.mulf %9, %1 : vector<8x128xf32>
    %11 = arith.select %8, %1, %10 : vector<8x128xi1>, vector<8x128xf32>
    %cst_6 = arith.constant 0.000000e+00 : f32
    %12 = vector.broadcast %cst_6 : f32 to vector<8x128xf32>
    %13 = arith.cmpf ogt, %5, %12 : vector<8x128xf32>
    %cst_7 = arith.constant 2.000000e-01 : f32
    %14 = vector.broadcast %cst_7 : f32 to vector<8x128xf32>
    %15 = arith.mulf %14, %5 : vector<8x128xf32>
    %16 = arith.select %13, %5, %15 : vector<8x128xi1>, vector<8x128xf32>
    %cst_8 = arith.constant 0.000000e+00 : f32
    %17 = vector.broadcast %cst_8 : f32 to vector<8x128xf32>
    %18 = arith.cmpf ogt, %6, %17 : vector<8x128xf32>
    %cst_9 = arith.constant 2.000000e-01 : f32
    %19 = vector.broadcast %cst_9 : f32 to vector<8x128xf32>
    %20 = arith.mulf %19, %6 : vector<8x128xf32>
    %21 = arith.select %18, %6, %20 : vector<8x128xi1>, vector<8x128xf32>
    %c0_10 = arith.constant 0 : index
    %c0_11 = arith.constant 0 : index
    %c0_12 = arith.constant 0 : index
    %22 = vector.load %arg4[%c0_10, %c0_11, %c0_12] : memref<3x8x8xf32, #tpu.memory_space<vmem>>, vector<1x8x8xf32>
    %23 = vector.shape_cast %22 : vector<1x8x8xf32> to vector<8x8xf32>
    %cst_13 = arith.constant dense<0.000000e+00> : vector<8x128xf32>
    %24 = tpu.matmul %23, %11, %cst_13 {dimension_numbers = #tpu.dot_dimension_numbers<[1], [0], [0], [1], [0, 0, 1, 1], [], []>} : vector<8x8xf32>, vector<8x128xf32>, vector<8x128xf32> -> vector<8x128xf32>
    %c1 = arith.constant 1 : index
    %c0_14 = arith.constant 0 : index
    %c0_15 = arith.constant 0 : index
    %25 = vector.load %arg4[%c1, %c0_14, %c0_15] : memref<3x8x8xf32, #tpu.memory_space<vmem>>, vector<1x8x8xf32>
    %26 = vector.shape_cast %25 : vector<1x8x8xf32> to vector<8x8xf32>
    %cst_16 = arith.constant dense<0.000000e+00> : vector<8x128xf32>
    %27 = tpu.matmul %26, %16, %cst_16 {dimension_numbers = #tpu.dot_dimension_numbers<[1], [0], [0], [1], [0, 0, 1, 1], [], []>} : vector<8x8xf32>, vector<8x128xf32>, vector<8x128xf32> -> vector<8x128xf32>
    %28 = arith.addf %24, %27 : vector<8x128xf32>
    %c2 = arith.constant 2 : index
    %c0_17 = arith.constant 0 : index
    %c0_18 = arith.constant 0 : index
    %29 = vector.load %arg4[%c2, %c0_17, %c0_18] : memref<3x8x8xf32, #tpu.memory_space<vmem>>, vector<1x8x8xf32>
    %30 = vector.shape_cast %29 : vector<1x8x8xf32> to vector<8x8xf32>
    %cst_19 = arith.constant dense<0.000000e+00> : vector<8x128xf32>
    %31 = tpu.matmul %30, %21, %cst_19 {dimension_numbers = #tpu.dot_dimension_numbers<[1], [0], [0], [1], [0, 0, 1, 1], [], []>} : vector<8x8xf32>, vector<8x128xf32>, vector<8x128xf32> -> vector<8x128xf32>
    %32 = arith.addf %28, %31 : vector<8x128xf32>
    %c0_20 = arith.constant 0 : index
    %c0_21 = arith.constant 0 : index
    %33 = vector.load %arg5[%c0_20, %c0_21] : memref<8x1xf32, #tpu.memory_space<vmem>>, vector<8x1xf32>
    %34 = vector.broadcast %33 : vector<8x1xf32> to vector<8x128xf32>
    %35 = arith.addf %32, %34 : vector<8x128xf32>
    %cst_22 = arith.constant 0.000000e+00 : f32
    %36 = vector.broadcast %cst_22 : f32 to vector<8x128xf32>
    %37 = arith.cmpf ogt, %35, %36 : vector<8x128xf32>
    %cst_23 = arith.constant 2.000000e-01 : f32
    %38 = vector.broadcast %cst_23 : f32 to vector<8x128xf32>
    %39 = arith.mulf %38, %35 : vector<8x128xf32>
    %40 = arith.select %37, %35, %39 : vector<8x128xi1>, vector<8x128xf32>
    %c0_24 = arith.constant 0 : index
    %c0_25 = arith.constant 0 : index
    %41 = vector.load %arg6[%c0_24, %c0_25] : memref<8x8xf32, #tpu.memory_space<vmem>>, vector<8x8xf32>
    %cst_26 = arith.constant dense<0.000000e+00> : vector<8x128xf32>
    %42 = tpu.matmul %41, %40, %cst_26 {dimension_numbers = #tpu.dot_dimension_numbers<[1], [0], [0], [1], [0, 0, 1, 1], [], []>} : vector<8x8xf32>, vector<8x128xf32>, vector<8x128xf32> -> vector<8x128xf32>
    %c0_27 = arith.constant 0 : index
    %c0_28 = arith.constant 0 : index
    %43 = vector.load %arg7[%c0_27, %c0_28] : memref<8x1xf32, #tpu.memory_space<vmem>>, vector<8x1xf32>
    %44 = vector.broadcast %43 : vector<8x1xf32> to vector<8x128xf32>
    %45 = arith.addf %42, %44 : vector<8x128xf32>
    %c0_29 = arith.constant 0 : index
    %c0_30 = arith.constant 0 : index
    %46 = vector.load %arg8[%c0_29, %c0_30] : memref<8x8xf32, #tpu.memory_space<vmem>>, vector<8x8xf32>
    %cst_31 = arith.constant dense<0.000000e+00> : vector<8x128xf32>
    %47 = tpu.matmul %46, %5, %cst_31 {dimension_numbers = #tpu.dot_dimension_numbers<[1], [0], [0], [1], [0, 0, 1, 1], [], []>} : vector<8x8xf32>, vector<8x128xf32>, vector<8x128xf32> -> vector<8x128xf32>
    %48 = arith.addf %45, %47 : vector<8x128xf32>
    %c0_32 = arith.constant 0 : index
    %c0_33 = arith.constant 0 : index
    %49 = vector.load %arg9[%c0_32, %c0_33] : memref<8x1xf32, #tpu.memory_space<vmem>>, vector<8x1xf32>
    %50 = vector.broadcast %49 : vector<8x1xf32> to vector<8x128xf32>
    %51 = arith.addf %48, %50 : vector<8x128xf32>
    %c0_34 = arith.constant 0 : index
    %c0_35 = arith.constant 0 : index
    %c0_36 = arith.constant 0 : index
    %52 = vector.load %arg10[%c0_34, %c0_35, %c0_36] : memref<1x8x128xf32, #tpu.memory_space<vmem>>, vector<1x8x128xf32>
    %53 = vector.shape_cast %52 : vector<1x8x128xf32> to vector<8x128xf32>
    %54 = vector.shape_cast %51 : vector<8x128xf32> to vector<1x8x128xf32>
    tpu.vector_store %arg10[%c0_34, %c0_35, %c0_36], %54 {strides = array<i32>} : memref<1x8x128xf32, #tpu.memory_space<vmem>>, vector<1x8x128xf32>,
    return
  }
  func.func @transform_0(%arg0: i32, %arg1: i32) -> (i32, i32, i32) {
    %c0_i32 = arith.constant 0 : i32
    %c0_i32_0 = arith.constant 0 : i32
    return %arg0, %c0_i32, %arg1 : i32, i32, i32
  }
  func.func @transform_1(%arg0: i32, %arg1: i32) -> (i32, i32, i32) {
    %c1_i32 = arith.constant 1 : i32
    %0 = arith.addi %arg1, %c1_i32 : i32
    %c1_i32_0 = arith.constant 1 : i32
    %1 = arith.muli %0, %c1_i32_0 : i32
    %c0_i32 = arith.constant 0 : i32
    %c0_i32_1 = arith.constant 0 : i32
    return %arg0, %c0_i32, %1 : i32, i32, i32
  }
  func.func @transform_2(%arg0: i32, %arg1: i32) -> (i32, i32, i32) {
    %c0_i32 = arith.constant 0 : i32
    %c0_i32_0 = arith.constant 0 : i32
    %c0_i32_1 = arith.constant 0 : i32
    %c0_i32_2 = arith.constant 0 : i32
    return %c0_i32, %c0_i32_0, %c0_i32_1 : i32, i32, i32
  }
  func.func @transform_3(%arg0: i32, %arg1: i32) -> (i32, i32) {
    %c0_i32 = arith.constant 0 : i32
    %c0_i32_0 = arith.constant 0 : i32
    %c0_i32_1 = arith.constant 0 : i32
    return %c0_i32, %c0_i32_0 : i32, i32
  }
  func.func @transform_4(%arg0: i32, %arg1: i32) -> (i32, i32) {
    %c0_i32 = arith.constant 0 : i32
    %c0_i32_0 = arith.constant 0 : i32
    %c0_i32_1 = arith.constant 0 : i32
    return %c0_i32, %c0_i32_0 : i32, i32
  }
  func.func @transform_5(%arg0: i32, %arg1: i32) -> (i32, i32) {
    %c0_i32 = arith.constant 0 : i32
    %c0_i32_0 = arith.constant 0 : i32
    %c0_i32_1 = arith.constant 0 : i32
    return %c0_i32, %c0_i32_0 : i32, i32
  }
  func.func @transform_6(%arg0: i32, %arg1: i32) -> (i32, i32) {
    %c0_i32 = arith.constant 0 : i32
    %c0_i32_0 = arith.constant 0 : i32
    %c0_i32_1 = arith.constant 0 : i32
    return %c0_i32, %c0_i32_0 : i32, i32
  }
  func.func @transform_7(%arg0: i32, %arg1: i32) -> (i32, i32) {
    %c0_i32 = arith.constant 0 : i32
    %c0_i32_0 = arith.constant 0 : i32
    %c0_i32_1 = arith.constant 0 : i32
    return %c0_i32, %c0_i32_0 : i32, i32
  }
  func.func @transform_8(%arg0: i32, %arg1: i32) -> (i32, i32, i32) {
    %c0_i32 = arith.constant 0 : i32
    %c0_i32_0 = arith.constant 0 : i32
    return %arg0, %c0_i32, %arg1 : i32, i32, i32
  }
}

</mosaic_0001>

<llo_original>
// kernel: residual_stack_forward.1
$region0: #{residual_stack_forward.1}
  #allocation0 [shape = 'u32[]', space=smem, size = 0x4, offset = 0x4, fixed_abs, tag = 'smem constant byte address 0x4 - core index']
  #allocation1 [shape = 'u32[144,128]{1,0:T(1,128)}', space=vmem, size = 0x12000, scoped, tag = 'internal scratch']
  %s0 = inlined_call_operand.vmem [shape: f32[2,8,256], index: 0, kind: input, shape index: {}, may-alias: {0,1}]
  %s1 = inlined_call_operand.vmem [shape: f32[2,8,256], index: 1, kind: input, shape index: {}, may-alias: {0,1}]
  %s2 = inlined_call_operand.vmem [shape: f32[3,8,8], index: 2, kind: input, shape index: {}]
  %s3 = inlined_call_operand.vmem [shape: f32[8,1], index: 3, kind: input, shape index: {}]
  %s4 = inlined_call_operand.vmem [shape: f32[8,8], index: 4, kind: input, shape index: {}]
  %s5 = inlined_call_operand.vmem [shape: f32[8,1], index: 5, kind: input, shape index: {}]
  %s6 = inlined_call_operand.vmem [shape: f32[8,8], index: 6, kind: input, shape index: {}]
  %s7 = inlined_call_operand.vmem [shape: f32[8,1], index: 7, kind: input, shape index: {}]
  %s8 = inlined_call_operand.hbm [shape: f32[2,8,128], index: 8, kind: output, shape index: {}]
  %s9 = sld [smem:[#allocation0]]
  $region65: #{residual_stack_forward.1} parent=0
    _
  %s11 = ssub.s32 1, %s9
  %s12 = scalar_select 0, %s11, %s9
  $region1: #{residual_stack_forward.1} parent=0
    #allocation2 [shape = 'u8[8192]{0}', space=vmem, size = 0x2000, scoped, tag = 'output window, operand 0']
    #allocation3 [shape = 's32[2]{0}', space=sflag, size = 0x8, scoped, tag = 'scoped memory for residual_stack_forward.1']
    %13 = vsyncpa [#allocation3], 0
    %s14 = scalar_lea.sflag [#allocation3], 1
    %15 = vsyncpa %s14, 0
    loop: start=0, step=1, limit=4
    $region2: #{residual_stack_forward.1} parent=1 // loop_pre_header
      _
    $region3: #{residual_stack_forward.1} parent=1 // loop_header
      %s17 = sphi 0, %s21
      %p18 = scmp.ge.s32.totalorder %s17, 4
      %s24 = sphi 0, %s36
      %s25 = sphi 0, %s32
      %s26 = sphi 0, %s24
      %s27 = sphi 0, %s25
      %s28 = sphi 0, %s26
      %s29 = sphi 0, %s27
      %s41 = sphi 0, %s43
      %s44 = sphi 0, %s41
      %s45 = sphi 0, %s44
      %s61 = sphi 0, %s45
      %s71 = sphi 0, %s73
      %s74 = sphi 0, %s71
      %s75 = sphi 0, %s74
      %s91 = sphi 0, %s75
      %s95 = sphi 0, %s95
      %s97 = sphi 0, %s95
      %s98 = sphi 0, %s97
      %s112 = sphi 0, %s98
      %s116 = sphi 0, %s116
      %s118 = sphi 0, %s116
      %s119 = sphi 0, %s118
      %s133 = sphi 0, %s119
      %s137 = sphi 0, %s137
      %s139 = sphi 0, %s137
      %s140 = sphi 0, %s139
      %s154 = sphi 0, %s140
      %s158 = sphi 0, %s158
      %s160 = sphi 0, %s158
      %s161 = sphi 0, %s160
      %s175 = sphi 0, %s161
      %s179 = sphi 0, %s179
      %s181 = sphi 0, %s179
      %s182 = sphi 0, %s181
      %s196 = sphi 0, %s182
      %s200 = sphi 0, %s200
      %s202 = sphi 0, %s200
      %s203 = sphi 0, %s202
      %s217 = sphi 0, %s203
      %s225 = sphi 0, %s227
      %s228 = sphi 0, %s225
      %s229 = sphi 0, %s228
      %s245 = sphi 0, %s229
    $region4: #{residual_stack_forward.1} parent=1 // loop_header_branch
      %20 = sbr.rel (%p18) target = $region8
    $region5: #{residual_stack_forward.1} parent=1 // loop_body
      %s22 = ssub.s32 %s17, 1
      %s23 = ssub.s32 %s17, 2
      %s30 = sadd.s32 1, %s25
      %p31 = scmp.ge.s32.totalorder %s30, 1
      %s32 = scalar_select %p31, 0, %s30
      %s33 = sadd.s32 1, %s24
      %s34 = scalar_select %p31, %s33, %s24
      %p35 = scmp.ge.s32.totalorder %s34, 2
      %s36 = scalar_select %p35, 0, %s34
      %s37 = ssub.s32 %s24, %s36
      %s38 = ssub.s32 %s25, %s32
      %s39 = sor.u32 %s37, %s38
      %p40 = scmp.eq.s32.totalorder %s39, 0
      %s42 = sadd.s32 %s41, 1
      %s43 = scalar_select %p40, %s41, %s42
      %p46 = pneg %p40
      %p47 = scmp.eq.s32.totalorder %s17, 1
      %p48 = por %p46, %p47
      %p49 = scmp.ne.s32.totalorder %s41, %s44
      %p50 = scmp.eq.s32.totalorder %s17, 0
      %p51 = por %p49, %p50
      %p52 = scmp.ne.s32.totalorder %s41, %s44
      %p53 = scmp.eq.s32.totalorder %s22, 1
      %p54 = por %p52, %p53
      %p55 = scmp.ne.s32.totalorder %s44, %s45
      %p56 = scmp.eq.s32.totalorder %s22, 0
      %p57 = por %p55, %p56
      %p58 = scmp.ne.s32.totalorder %s44, %s45
      %p59 = scmp.eq.s32.totalorder %s23, 1
      %p60 = por %p58, %p59
      %p62 = scmp.ne.s32.totalorder %s45, %s61
      %p63 = scmp.eq.s32.totalorder %s23, 0
      %p64 = por %p62, %p63
      %s65 = sadd.s32 %s25, 1
      %s66 = sadd.s32 %s32, 1
      %s67 = ssub.s32 %s24, %s36
      %s68 = ssub.s32 %s65, %s66
      %s69 = sor.u32 %s67, %s68
      %p70 = scmp.eq.s32.totalorder %s69, 0
      %s72 = sadd.s32 %s71, 1
      %s73 = scalar_select %p70, %s71, %s72
      %p76 = pneg %p70
      %p77 = scmp.eq.s32.totalorder %s17, 1
      %p78 = por %p76, %p77
      %p79 = scmp.ne.s32.totalorder %s71, %s74
      %p80 = scmp.eq.s32.totalorder %s17, 0
      %p81 = por %p79, %p80
      %p82 = scmp.ne.s32.totalorder %s71, %s74
      %p83 = scmp.eq.s32.totalorder %s22, 1
      %p84 = por %p82, %p83
      %p85 = scmp.ne.s32.totalorder %s74, %s75
      %p86 = scmp.eq.s32.totalorder %s22, 0
      %p87 = por %p85, %p86
      %p88 = scmp.ne.s32.totalorder %s74, %s75
      %p89 = scmp.eq.s32.totalorder %s23, 1
      %p90 = por %p88, %p89
      %p92 = scmp.ne.s32.totalorder %s75, %s91
      %p93 = scmp.eq.s32.totalorder %s23, 0
      %p94 = por %p92, %p93
      %s96 = sadd.s32 %s95, 1
      %p99 = scmp.eq.s32.totalorder %s17, 1
      %p100 = scmp.ne.s32.totalorder %s95, %s97
      %p101 = scmp.eq.s32.totalorder %s17, 0
      %p102 = por %p100, %p101
      %p103 = scmp.ne.s32.totalorder %s95, %s97
      %p104 = scmp.eq.s32.totalorder %s22, 1
      %p105 = por %p103, %p104
      %p106 = scmp.ne.s32.totalorder %s97, %s98
      %p107 = scmp.eq.s32.totalorder %s22, 0
      %p108 = por %p106, %p107
      %p109 = scmp.ne.s32.totalorder %s97, %s98
      %p110 = scmp.eq.s32.totalorder %s23, 1
      %p111 = por %p109, %p110
      %p113 = scmp.ne.s32.totalorder %s98, %s112
      %p114 = scmp.eq.s32.totalorder %s23, 0
      %p115 = por %p113, %p114
      %s117 = sadd.s32 %s116, 1
      %p120 = scmp.eq.s32.totalorder %s17, 1
      %p121 = scmp.ne.s32.totalorder %s116, %s118
      %p122 = scmp.eq.s32.totalorder %s17, 0
      %p123 = por %p121, %p122
      %p124 = scmp.ne.s32.totalorder %s116, %s118
      %p125 = scmp.eq.s32.totalorder %s22, 1
      %p126 = por %p124, %p125
      %p127 = scmp.ne.s32.totalorder %s118, %s119
      %p128 = scmp.eq.s32.totalorder %s22, 0
      %p129 = por %p127, %p128
      %p130 = scmp.ne.s32.totalorder %s118, %s119
      %p131 = scmp.eq.s32.totalorder %s23, 1
      %p132 = por %p130, %p131
      %p134 = scmp.ne.s32.totalorder %s119, %s133
      %p135 = scmp.eq.s32.totalorder %s23, 0
      %p136 = por %p134, %p135
      %s138 = sadd.s32 %s137, 1
      %p141 = scmp.eq.s32.totalorder %s17, 1
      %p142 = scmp.ne.s32.totalorder %s137, %s139
      %p143 = scmp.eq.s32.totalorder %s17, 0
      %p144 = por %p142, %p143
      %p145 = scmp.ne.s32.totalorder %s137, %s139
      %p146 = scmp.eq.s32.totalorder %s22, 1
      %p147 = por %p145, %p146
      %p148 = scmp.ne.s32.totalorder %s139, %s140
      %p149 = scmp.eq.s32.totalorder %s22, 0
      %p150 = por %p148, %p149
      %p151 = scmp.ne.s32.totalorder %s139, %s140
      %p152 = scmp.eq.s32.totalorder %s23, 1
      %p153 = por %p151, %p152
      %p155 = scmp.ne.s32.totalorder %s140, %s154
      %p156 = scmp.eq.s32.totalorder %s23, 0
      %p157 = por %p155, %p156
      %s159 = sadd.s32 %s158, 1
      %p162 = scmp.eq.s32.totalorder %s17, 1
      %p163 = scmp.ne.s32.totalorder %s158, %s160
      %p164 = scmp.eq.s32.totalorder %s17, 0
      %p165 = por %p163, %p164
      %p166 = scmp.ne.s32.totalorder %s158, %s160
      %p167 = scmp.eq.s32.totalorder %s22, 1
      %p168 = por %p166, %p167
      %p169 = scmp.ne.s32.totalorder %s160, %s161
      %p170 = scmp.eq.s32.totalorder %s22, 0
      %p171 = por %p169, %p170
      %p172 = scmp.ne.s32.totalorder %s160, %s161
      %p173 = scmp.eq.s32.totalorder %s23, 1
      %p174 = por %p172, %p173
      %p176 = scmp.ne.s32.totalorder %s161, %s175
      %p177 = scmp.eq.s32.totalorder %s23, 0
      %p178 = por %p176, %p177
      %s180 = sadd.s32 %s179, 1
      %p183 = scmp.eq.s32.totalorder %s17, 1
      %p184 = scmp.ne.s32.totalorder %s179, %s181
      %p185 = scmp.eq.s32.totalorder %s17, 0
      %p186 = por %p184, %p185
      %p187 = scmp.ne.s32.totalorder %s179, %s181
      %p188 = scmp.eq.s32.totalorder %s22, 1
      %p189 = por %p187, %p188
      %p190 = scmp.ne.s32.totalorder %s181, %s182
      %p191 = scmp.eq.s32.totalorder %s22, 0
      %p192 = por %p190, %p191
      %p193 = scmp.ne.s32.totalorder %s181, %s182
      %p194 = scmp.eq.s32.totalorder %s23, 1
      %p195 = por %p193, %p194
      %p197 = scmp.ne.s32.totalorder %s182, %s196
      %p198 = scmp.eq.s32.totalorder %s23, 0
      %p199 = por %p197, %p198
      %s201 = sadd.s32 %s200, 1
      %p204 = scmp.eq.s32.totalorder %s17, 1
      %p205 = scmp.ne.s32.totalorder %s200, %s202
      %p206 = scmp.eq.s32.totalorder %s17, 0
      %p207 = por %p205, %p206
      %p208 = scmp.ne.s32.totalorder %s200, %s202
      %p209 = scmp.eq.s32.totalorder %s22, 1
      %p210 = por %p208, %p209
      %p211 = scmp.ne.s32.totalorder %s202, %s203
      %p212 = scmp.eq.s32.totalorder %s22, 0
      %p213 = por %p211, %p212
      %p214 = scmp.ne.s32.totalorder %s202, %s203
      %p215 = scmp.eq.s32.totalorder %s23, 1
      %p216 = por %p214, %p215
      %p218 = scmp.ne.s32.totalorder %s203, %s217
      %p219 = scmp.eq.s32.totalorder %s23, 0
      %p220 = por %p218, %p219
      %s221 = ssub.s32 %s24, %s36
      %s222 = ssub.s32 %s25, %s32
      %s223 = sor.u32 %s221, %s222
      %p224 = scmp.eq.s32.totalorder %s223, 0
      %s226 = sadd.s32 %s225, 1
      %s227 = scalar_select %p224, %s225, %s226
      %p230 = pneg %p224
      %p231 = scmp.eq.s32.totalorder %s17, 1
      %p232 = por %p230, %p231
      %p233 = scmp.ne.s32.totalorder %s225, %s228
      %p234 = scmp.eq.s32.totalorder %s17, 0
      %p235 = por %p233, %p234
      %p236 = scmp.ne.s32.totalorder %s225, %s228
      %p237 = scmp.eq.s32.totalorder %s22, 1
      %p238 = por %p236, %p237
      %p239 = scmp.ne.s32.totalorder %s228, %s229
      %p240 = scmp.eq.s32.totalorder %s22, 0
      %p241 = por %p239, %p240
      %p242 = scmp.ne.s32.totalorder %s228, %s229
      %p243 = scmp.eq.s32.totalorder %s23, 1
      %p244 = por %p242, %p243
      %p246 = scmp.ne.s32.totalorder %s229, %s245
      %p247 = scmp.eq.s32.totalorder %s23, 0
      %p248 = por %p246, %p247
      %p249 = scmp.le.s32.totalorder 1, %s17
      %p250 = scmp.lt.s32.totalorder %s17, 3
      %p251 = pnand %p249, %p250
      %p252 = pneg %p251
      // Predicated region
      $region9: #{residual_stack_forward.1} parent=5 // pred_check
        _
      $region10: #{residual_stack_forward.1} parent=5 // pred_check_branch
        %254 = sbr.rel (%p251) target = $region12
      $region11: #{residual_stack_forward.1} parent=5 // pred_region
        %s255 = ssub.s32 %s17, 1
        // Predicated region
        $region13: #{residual_stack_forward.1} parent=11 // pred_check
          %p256 = pneg %p108
        $region14: #{residual_stack_forward.1} parent=11 // pred_check_branch
          %258 = sbr.rel (%p256) target = $region16
        $region15: #{residual_stack_forward.1} parent=11 // pred_region
          _
        $region16: #{residual_stack_forward.1} parent=11 // pred_fallthru
          _
        // Predicated region
        $region17: #{residual_stack_forward.1} parent=11 // pred_check
          %p259 = pneg %p129
        $region18: #{residual_stack_forward.1} parent=11 // pred_check_branch
          %261 = sbr.rel (%p259) target = $region20
        $region19: #{residual_stack_forward.1} parent=11 // pred_region
          _
        $region20: #{residual_stack_forward.1} parent=11 // pred_fallthru
          _
        // Predicated region
        $region21: #{residual_stack_forward.1} parent=11 // pred_check
          %p262 = pneg %p150
        $region22: #{residual_stack_forward.1} parent=11 // pred_check_branch
          %264 = sbr.rel (%p262) target = $region24
        $region23: #{residual_stack_forward.1} parent=11 // pred_region
          _
        $region24: #{residual_stack_forward.1} parent=11 // pred_fallthru
          _
        // Predicated region
        $region25: #{residual_stack_forward.1} parent=11 // pred_check
          %p265 = pneg %p171
        $region26: #{residual_stack_forward.1} parent=11 // pred_check_branch
          %267 = sbr.rel (%p265) target = $region28
        $region27: #{residual_stack_forward.1} parent=11 // pred_region
          _
        $region28: #{residual_stack_forward.1} parent=11 // pred_fallthru
          _
        // Predicated region
        $region29: #{residual_stack_forward.1} parent=11 // pred_check
          %p268 = pneg %p192
        $region30: #{residual_stack_forward.1} parent=11 // pred_check_branch
          %270 = sbr.rel (%p268) target = $region32
        $region31: #{residual_stack_forward.1} parent=11 // pred_region
          _
        $region32: #{residual_stack_forward.1} parent=11 // pred_fallthru
          _
        // Predicated region
        $region33: #{residual_stack_forward.1} parent=11 // pred_check
          %p271 = pneg %p213
        $region34: #{residual_stack_forward.1} parent=11 // pred_check_branch
          %273 = sbr.rel (%p271) target = $region36
        $region35: #{residual_stack_forward.1} parent=11 // pred_region
          _
        $region36: #{residual_stack_forward.1} parent=11 // pred_fallthru
          _
      $region12: #{residual_stack_forward.1} parent=5 // pred_fallthru
        _
      %p274 = scmp.lt.s32.totalorder %s17, 2
      // Predicated region
      $region37: #{residual_stack_forward.1} parent=5 // pred_check
        %p275 = pneg %p274
      $region38: #{residual_stack_forward.1} parent=5 // pred_check_branch
        %277 = sbr.rel (%p275) target = $region40
      $region39: #{residual_stack_forward.1} parent=5 // pred_region
        // Predicated region
        $region41: #{residual_stack_forward.1} parent=39 // pred_check
          %p278 = pneg %p51
        $region42: #{residual_stack_forward.1} parent=39 // pred_check_branch
          %280 = sbr.rel (%p278) target = $region44
        $region43: #{residual_stack_forward.1} parent=39 // pred_region
          %p281 = scmp.lt.s32.totalorder %s24, 1
          %s282 = scalar_select %p281, %s24, 1
          %p283 = scmp.lt.s32.totalorder %s25, 1
          %s284 = scalar_select %p283, %s25, 1
          %s285 = smul.addr %s282, 2
          %s286 = sadd.s32 %s284, %s285
          %s287 = smul.addr %s286, 8
          %s288 = scalar_lea.vmem %s0, %s287
        $region44: #{residual_stack_forward.1} parent=39 // pred_fallthru
          _
        // Predicated region
        $region45: #{residual_stack_forward.1} parent=39 // pred_check
          %p289 = pneg %p81
        $region46: #{residual_stack_forward.1} parent=39 // pred_check_branch
          %291 = sbr.rel (%p289) target = $region48
        $region47: #{residual_stack_forward.1} parent=39 // pred_region
          %s292 = sadd.s32 %s25, 1
          %p293 = scmp.lt.s32.totalorder %s24, 1
          %s294 = scalar_select %p293, %s24, 1
          %p295 = scmp.lt.s32.totalorder %s292, 1
          %s296 = scalar_select %p295, %s292, 1
          %s297 = smul.addr %s294, 2
          %s298 = sadd.s32 %s296, %s297
          %s299 = smul.addr %s298, 8
          %s300 = scalar_lea.vmem %s1, %s299
          %s301 = sadd.s32 %s25, 1
        $region48: #{residual_stack_forward.1} parent=39 // pred_fallthru
          _
      $region40: #{residual_stack_forward.1} parent=5 // pred_fallthru
        _
      %p302 = scmp.le.s32.totalorder 1, %s17
      %p303 = scmp.lt.s32.totalorder %s17, 3
      %p304 = pnand %p302, %p303
      %p305 = pneg %p304
      // Predicated region
      $region49: #{residual_stack_forward.1} parent=5 // pred_check
        _
      $region50: #{residual_stack_forward.1} parent=5 // pred_check_branch
        %307 = sbr.rel (%p304) target = $region52
      $region51: #{residual_stack_forward.1} parent=5 // pred_region
        %s308 = ssub.s32 %s17, 1
        %p309 = scmp.lt.s32.totalorder %s26, 1
        %s310 = scalar_select %p309, %s26, 1
        %p311 = scmp.lt.s32.totalorder %s27, 1
        %s312 = scalar_select %p311, %s27, 1
        %s313 = smul.addr %s310, 2
        %s314 = sadd.s32 %s312, %s313
        %s315 = smul.addr %s314, 8
        %s316 = scalar_lea.vmem %s0, %s315
        %p317 = pneg %p57
        %p318 = pneg %p54
        %s319 = sadd.s32 %s27, 1
        %p320 = scmp.lt.s32.totalorder %s26, 1
        %s321 = scalar_select %p320, %s26, 1
        %p322 = scmp.lt.s32.totalorder %s319, 1
        %s323 = scalar_select %p322, %s319, 1
        %s324 = smul.addr %s321, 2
        %s325 = sadd.s32 %s323, %s324
        %s326 = smul.addr %s325, 8
        %s327 = scalar_lea.vmem %s1, %s326
        %p328 = pneg %p87
        %p329 = pneg %p84
        %p330 = pneg %p108
        %p331 = pneg %p105
        %p332 = pneg %p129
        %p333 = pneg %p126
        %p334 = pneg %p150
        %p335 = pneg %p147
        %p336 = pneg %p171
        %p337 = pneg %p168
        %p338 = pneg %p192
        %p339 = pneg %p189
        %p340 = pneg %p213
        %p341 = pneg %p210
        %p342 = pneg %p241
        %p343 = pneg %p238
        %s344 = sand.u32 %s228, 1
        %s345 = scalar_lea.sflag [#allocation3], %s344
        %s346 = sand.u32 %s228, 1
        %s347 = smul.addr %s346, 8
        %s348 = scalar_lea.vmem [#allocation2], %s347
        %p349 = scmp.lt.s32.totalorder %s26, 1
        %s350 = scalar_select %p349, %s26, 1
        %p351 = scmp.lt.s32.totalorder %s27, 1
        %s352 = scalar_select %p351, %s27, 1
        %s353 = smul.addr %s350, 2
        %s354 = sadd.s32 %s352, %s353
        %s355 = smul.addr %s354, 8
        %s356 = scalar_lea.vmem %s0, %s355
        %s357 = sadd.s32 %s27, 1
        %p358 = scmp.lt.s32.totalorder %s26, 1
        %s359 = scalar_select %p358, %s26, 1
        %p360 = scmp.lt.s32.totalorder %s357, 1
        %s361 = scalar_select %p360, %s357, 1
        %s362 = smul.addr %s359, 2
        %s363 = sadd.s32 %s361, %s362
        %s364 = smul.addr %s363, 8
        %s365 = scalar_lea.vmem %s1, %s364
        %s366 = sadd.s32 %s27, 1
        %v367 = vld [vmem:[%s356] sm:$0xff]
        %v368 = vld [vmem:[%s365] sm:$0xff]
        %vm369 = vcmp.gt.f32.partialorder %v367, 0.0
        %v370 = vmul.f32 %v367, 0.2
        %v371 = vsel %vm369, %v367, %v370
        %vm372 = vcmp.gt.f32.partialorder %v368, 0.0
        %v373 = vmul.f32 %v368, 0.2
        %v374 = vsel %vm372, %v368, %v373
        %v375 = vld [vmem:[%s2] sm:$0xff]
        %s376 = scalar_lea.vmem %s2, 8
        %v377 = vld [vmem:[%s376] sm:$0xff]
        %380 = vrot.lane.b32.xlu0 %v371, 126
        %v381 = vpop.permute.xlu0 %380
        %382 = vrot.lane.b32.xlu0 %v374, 126
        %v383 = vpop.permute.xlu0 %382
        %vm384 = vcmask 1031168
        %v385 = vsel %vm384, %v381, %v383
        %vm387 = vcmask 64512
        %v389 = vsel %vm387, %v377, 0
        %391 = vmatprep.subr.mxu0 0.0
        %392 = vmatpush1.msra.mxu0 %v385
        %393 = vmatprep.subr.mxu0 0.0
        %394 = vmatpush1.msra.mxu0 0.0
        %395 = vmatprep.subr.mxu0 0.0
        %396 = vmatpush1.msra.mxu0 0.0
        %397 = vmatprep.subr.mxu0 0.0
        %398 = vmatpush1.msra.mxu0 0.0
        %399 = vmatprep.subr.mxu0 0.0
        %400 = vmatpush1.msra.mxu0 0.0
        %401 = vmatprep.subr.mxu0 0.0
        %402 = vmatpush1.msra.mxu0 0.0
        %403 = vmatprep.subr.mxu0 0.0
        %404 = vmatpush1.msra.mxu0 0.0
        %405 = vmatprep.subr.mxu0 0.0
        %406 = vmatpush1.msra.mxu0 0.0
        %407 = vmatprep.subr.mxu0 0.0
        %408 = vmatpush1.msra.mxu0 0.0
        %409 = vmatprep.subr.mxu0 0.0
        %410 = vmatpush1.msra.mxu0 0.0
        %411 = vmatprep.subr.mxu0 0.0
        %412 = vmatpush1.msra.mxu0 0.0
        %413 = vmatprep.subr.mxu0 0.0
        %414 = vmatpush1.msra.mxu0 0.0
        %415 = vmatprep.subr.mxu0 0.0
        %416 = vmatpush1.msra.mxu0 0.0
        %417 = vmatprep.subr.mxu0 0.0
        %418 = vmatpush1.msra.mxu0 0.0
        %419 = vmatprep.subr.mxu0 0.0
        %420 = vmatpush1.msra.mxu0 0.0
        %421 = vmatprep.subr.mxu0 0.0
        %422 = vmatpush1.msra.mxu0 0.0
        %423 = vmatprep.subr.mxu0 0.0
        %424 = vmatpush1.msra.mxu0 0.0
        %425 = vmatprep.subr.mxu0 0.0
        %426 = vmatpush1.msra.mxu0 0.0
        %427 = vmatprep.subr.mxu0 0.0
        %428 = vmatpush1.msra.mxu0 0.0
        %429 = vmatprep.subr.mxu0 0.0
        %430 = vmatpush1.msra.mxu0 0.0
        %431 = vmatprep.subr.mxu0 0.0
        %432 = vmatpush1.msra.mxu0 0.0
        %433 = vmatprep.subr.mxu0 0.0
        %434 = vmatpush1.msra.mxu0 0.0
        %435 = vmatprep.subr.mxu0 0.0
        %436 = vmatpush1.msra.mxu0 0.0
        %437 = vmatprep.subr.mxu0 0.0
        %438 = vmatpush1.msra.mxu0 0.0
        %439 = vmatprep.subr.mxu0 0.0
        %440 = vmatpush1.msra.mxu0 0.0
        %441 = vmatprep.subr.mxu0 0.0
        %442 = vmatpush1.msra.mxu0 0.0
        %443 = vmatprep.subr.mxu0 0.0
        %444 = vmatpush1.msra.mxu0 0.0
        %445 = vmatprep.subr.mxu0 0.0
        %446 = vmatpush1.msra.mxu0 0.0
        %447 = vmatprep.subr.mxu0 0.0
        %448 = vmatpush1.msra.mxu0 0.0
        %449 = vmatprep.subr.mxu0 0.0
        %450 = vmatpush1.msra.mxu0 0.0
        %451 = vmatprep.subr.mxu0 0.0
        %452 = vmatpush1.msra.mxu0 0.0
        %453 = vmatprep.subr.mxu0 0.0
        %454 = vmatpush1.msra.mxu0 0.0
        %455 = vmatprep.mubr.f32.mxu0 0.0
        %456 = vmatmul.mubr.f32.gmra.mrb[0].mxu0 %v389
        %v457 = vpop.f32.mrb[0].mxu0
        %v458 = vadd.f32 0.0, %v457
        %v459 = vpop.f32.mrb[0].mxu0
        %460 = vdwg.mxu0
        %v462 = vsel %vm387, %v375, 0
        %464 = vmatprep.subr.mxu0 0.0
        %465 = vmatpush1.msra.mxu0 %v371
        %466 = vmatprep.subr.mxu0 0.0
        %467 = vmatpush1.msra.mxu0 0.0
        %468 = vmatprep.subr.mxu0 0.0
        %469 = vmatpush1.msra.mxu0 0.0
        %470 = vmatprep.subr.mxu0 0.0
        %471 = vmatpush1.msra.mxu0 0.0
        %472 = vmatprep.subr.mxu0 0.0
        %473 = vmatpush1.msra.mxu0 0.0
        %474 = vmatprep.subr.mxu0 0.0
        %475 = vmatpush1.msra.mxu0 0.0
        %476 = vmatprep.subr.mxu0 0.0
        %477 = vmatpush1.msra.mxu0 0.0
        %478 = vmatprep.subr.mxu0 0.0
        %479 = vmatpush1.msra.mxu0 0.0
        %480 = vmatprep.subr.mxu0 0.0
        %481 = vmatpush1.msra.mxu0 0.0
        %482 = vmatprep.subr.mxu0 0.0
        %483 = vmatpush1.msra.mxu0 0.0
        %484 = vmatprep.subr.mxu0 0.0
        %485 = vmatpush1.msra.mxu0 0.0
        %486 = vmatprep.subr.mxu0 0.0
        %487 = vmatpush1.msra.mxu0 0.0
        %488 = vmatprep.subr.mxu0 0.0
        %489 = vmatpush1.msra.mxu0 0.0
        %490 = vmatprep.subr.mxu0 0.0
        %491 = vmatpush1.msra.mxu0 0.0
        %492 = vmatprep.subr.mxu0 0.0
        %493 = vmatpush1.msra.mxu0 0.0
        %494 = vmatprep.subr.mxu0 0.0
        %495 = vmatpush1.msra.mxu0 0.0
        %496 = vmatprep.subr.mxu0 0.0
        %497 = vmatpush1.msra.mxu0 0.0
        %498 = vmatprep.subr.mxu0 0.0
        %499 = vmatpush1.msra.mxu0 0.0
        %500 = vmatprep.subr.mxu0 0.0
        %501 = vmatpush1.msra.mxu0 0.0
        %502 = vmatprep.subr.mxu0 0.0
        %503 = vmatpush1.msra.mxu0 0.0
        %504 = vmatprep.subr.mxu0 0.0
        %505 = vmatpush1.msra.mxu0 0.0
        %506 = vmatprep.subr.mxu0 0.0
        %507 = vmatpush1.msra.mxu0 0.0
        %508 = vmatprep.subr.mxu0 0.0
        %509 = vmatpush1.msra.mxu0 0.0
        %510 = vmatprep.subr.mxu0 0.0
        %511 = vmatpush1.msra.mxu0 0.0
        %512 = vmatprep.subr.mxu0 0.0
        %513 = vmatpush1.msra.mxu0 0.0
        %514 = vmatprep.subr.mxu0 0.0
        %515 = vmatpush1.msra.mxu0 0.0
        %516 = vmatprep.subr.mxu0 0.0
        %517 = vmatpush1.msra.mxu0 0.0
        %518 = vmatprep.subr.mxu0 0.0
        %519 = vmatpush1.msra.mxu0 0.0
        %520 = vmatprep.subr.mxu0 0.0
        %521 = vmatpush1.msra.mxu0 0.0
        %522 = vmatprep.subr.mxu0 0.0
        %523 = vmatpush1.msra.mxu0 0.0
        %524 = vmatprep.subr.mxu0 0.0
        %525 = vmatpush1.msra.mxu0 0.0
        %526 = vmatprep.subr.mxu0 0.0
        %527 = vmatpush1.msra.mxu0 0.0
        %528 = vmatprep.mubr.f32.mxu0 0.0
        %529 = vmatmul.mubr.f32.gmra.mrb[0].mxu0 %v462
        %v530 = vpop.f32.mrb[0].mxu0
        %v531 = vadd.f32 %v458, %v530
        %v532 = vpop.f32.mrb[0].mxu0
        %533 = vdwg.mxu0
        %s534 = scalar_lea.vmem %s2, 16
        %v535 = vld [vmem:[%s534] sm:$0xff]
        %536 = vrot.lane.b32.xlu0 %v371, 124
        %v537 = vpop.permute.xlu0 %536
        %538 = vrot.lane.b32.xlu0 %v374, 124
        %v539 = vpop.permute.xlu0 %538
        %vm540 = vcmask 1014784
        %v541 = vsel %vm540, %v537, %v539
        %v544 = vsel %vm387, %v535, 0
        %546 = vmatprep.subr.mxu0 0.0
        %547 = vmatpush1.msra.mxu0 %v541
        %548 = vmatprep.subr.mxu0 0.0
        %549 = vmatpush1.msra.mxu0 0.0
        %550 = vmatprep.subr.mxu0 0.0
        %551 = vmatpush1.msra.mxu0 0.0
        %552 = vmatprep.subr.mxu0 0.0
        %553 = vmatpush1.msra.mxu0 0.0
        %554 = vmatprep.subr.mxu0 0.0
        %555 = vmatpush1.msra.mxu0 0.0
        %556 = vmatprep.subr.mxu0 0.0
        %557 = vmatpush1.msra.mxu0 0.0
        %558 = vmatprep.subr.mxu0 0.0
        %559 = vmatpush1.msra.mxu0 0.0
        %560 = vmatprep.subr.mxu0 0.0
        %561 = vmatpush1.msra.mxu0 0.0
        %562 = vmatprep.subr.mxu0 0.0
        %563 = vmatpush1.msra.mxu0 0.0
        %564 = vmatprep.subr.mxu0 0.0
        %565 = vmatpush1.msra.mxu0 0.0
        %566 = vmatprep.subr.mxu0 0.0
        %567 = vmatpush1.msra.mxu0 0.0
        %568 = vmatprep.subr.mxu0 0.0
        %569 = vmatpush1.msra.mxu0 0.0
        %570 = vmatprep.subr.mxu0 0.0
        %571 = vmatpush1.msra.mxu0 0.0
        %572 = vmatprep.subr.mxu0 0.0
        %573 = vmatpush1.msra.mxu0 0.0
        %574 = vmatprep.subr.mxu0 0.0
        %575 = vmatpush1.msra.mxu0 0.0
        %576 = vmatprep.subr.mxu0 0.0
        %577 = vmatpush1.msra.mxu0 0.0
        %578 = vmatprep.subr.mxu0 0.0
        %579 = vmatpush1.msra.mxu0 0.0
        %580 = vmatprep.subr.mxu0 0.0
        %581 = vmatpush1.msra.mxu0 0.0
        %582 = vmatprep.subr.mxu0 0.0
        %583 = vmatpush1.msra.mxu0 0.0
        %584 = vmatprep.subr.mxu0 0.0
        %585 = vmatpush1.msra.mxu0 0.0
        %586 = vmatprep.subr.mxu0 0.0
        %587 = vmatpush1.msra.mxu0 0.0
        %588 = vmatprep.subr.mxu0 0.0
        %589 = vmatpush1.msra.mxu0 0.0
        %590 = vmatprep.subr.mxu0 0.0
        %591 = vmatpush1.msra.mxu0 0.0
        %592 = vmatprep.subr.mxu0 0.0
        %593 = vmatpush1.msra.mxu0 0.0
        %594 = vmatprep.subr.mxu0 0.0
        %595 = vmatpush1.msra.mxu0 0.0
        %596 = vmatprep.subr.mxu0 0.0
        %597 = vmatpush1.msra.mxu0 0.0
        %598 = vmatprep.subr.mxu0 0.0
        %599 = vmatpush1.msra.mxu0 0.0
        %600 = vmatprep.subr.mxu0 0.0
        %601 = vmatpush1.msra.mxu0 0.0
        %602 = vmatprep.subr.mxu0 0.0
        %603 = vmatpush1.msra.mxu0 0.0
        %604 = vmatprep.subr.mxu0 0.0
        %605 = vmatpush1.msra.mxu0 0.0
        %606 = vmatprep.subr.mxu0 0.0
        %607 = vmatpush1.msra.mxu0 0.0
        %608 = vmatprep.subr.mxu0 0.0
        %609 = vmatpush1.msra.mxu0 0.0
        %610 = vmatprep.mubr.f32.mxu0 0.0
        %611 = vmatmul.mubr.f32.gmra.mrb[0].mxu0 %v544
        %v612 = vpop.f32.mrb[0].mxu0
        %v613 = vadd.f32 0.0, %v612
        %v614 = vpop.f32.mrb[0].mxu0
        %615 = vdwg.mxu0
        %v616 = vadd.f32 %v531, %v613
        %v617 = vld [vmem:[%s3] sm:$0xff]
        %619 = vset.pattern.permute.xlu0 0
        %620 = vperm.xlu0 %619, %v617
        %v621 = vpop.permute.xlu0 %620
        %v623 = vadd.f32 %v616, %v621
        %vm624 = vcmp.gt.f32.partialorder %v623, 0.0
        %v625 = vmul.f32 %v623, 0.2
        %v626 = vsel %vm624, %v623, %v625
        %v627 = vld [vmem:[%s4] sm:$0xff]
        %v628 = vld [vmem:[%s5] sm:$0xff]
        %630 = vset.pattern.permute.xlu0 0
        %631 = vperm.xlu0 %630, %v628
        %v632 = vpop.permute.xlu0 %631
        %v635 = vsel %vm387, %v627, 0
        %637 = vmatprep.subr.mxu0 0.0
        %638 = vmatpush1.msra.mxu0 %v626
        %639 = vmatprep.subr.mxu0 0.0
        %640 = vmatpush1.msra.mxu0 0.0
        %641 = vmatprep.subr.mxu0 0.0
        %642 = vmatpush1.msra.mxu0 0.0
        %643 = vmatprep.subr.mxu0 0.0
        %644 = vmatpush1.msra.mxu0 0.0
        %645 = vmatprep.subr.mxu0 0.0
        %646 = vmatpush1.msra.mxu0 0.0
        %647 = vmatprep.subr.mxu0 0.0
        %648 = vmatpush1.msra.mxu0 0.0
        %649 = vmatprep.subr.mxu0 0.0
        %650 = vmatpush1.msra.mxu0 0.0
        %651 = vmatprep.subr.mxu0 0.0
        %652 = vmatpush1.msra.mxu0 0.0
        %653 = vmatprep.subr.mxu0 0.0
        %654 = vmatpush1.msra.mxu0 0.0
        %655 = vmatprep.subr.mxu0 0.0
        %656 = vmatpush1.msra.mxu0 0.0
        %657 = vmatprep.subr.mxu0 0.0
        %658 = vmatpush1.msra.mxu0 0.0
        %659 = vmatprep.subr.mxu0 0.0
        %660 = vmatpush1.msra.mxu0 0.0
        %661 = vmatprep.subr.mxu0 0.0
        %662 = vmatpush1.msra.mxu0 0.0
        %663 = vmatprep.subr.mxu0 0.0
        %664 = vmatpush1.msra.mxu0 0.0
        %665 = vmatprep.subr.mxu0 0.0
        %666 = vmatpush1.msra.mxu0 0.0
        %667 = vmatprep.subr.mxu0 0.0
        %668 = vmatpush1.msra.mxu0 0.0
        %669 = vmatprep.subr.mxu0 0.0
        %670 = vmatpush1.msra.mxu0 0.0
        %671 = vmatprep.subr.mxu0 0.0
        %672 = vmatpush1.msra.mxu0 0.0
        %673 = vmatprep.subr.mxu0 0.0
        %674 = vmatpush1.msra.mxu0 0.0
        %675 = vmatprep.subr.mxu0 0.0
        %676 = vmatpush1.msra.mxu0 0.0
        %677 = vmatprep.subr.mxu0 0.0
        %678 = vmatpush1.msra.mxu0 0.0
        %679 = vmatprep.subr.mxu0 0.0
        %680 = vmatpush1.msra.mxu0 0.0
        %681 = vmatprep.subr.mxu0 0.0
        %682 = vmatpush1.msra.mxu0 0.0
        %683 = vmatprep.subr.mxu0 0.0
        %684 = vmatpush1.msra.mxu0 0.0
        %685 = vmatprep.subr.mxu0 0.0
        %686 = vmatpush1.msra.mxu0 0.0
        %687 = vmatprep.subr.mxu0 0.0
        %688 = vmatpush1.msra.mxu0 0.0
        %689 = vmatprep.subr.mxu0 0.0
        %690 = vmatpush1.msra.mxu0 0.0
        %691 = vmatprep.subr.mxu0 0.0
        %692 = vmatpush1.msra.mxu0 0.0
        %693 = vmatprep.subr.mxu0 0.0
        %694 = vmatpush1.msra.mxu0 0.0
        %695 = vmatprep.subr.mxu0 0.0
        %696 = vmatpush1.msra.mxu0 0.0
        %697 = vmatprep.subr.mxu0 0.0
        %698 = vmatpush1.msra.mxu0 0.0
        %699 = vmatprep.subr.mxu0 0.0
        %700 = vmatpush1.msra.mxu0 0.0
        %701 = vmatprep.mubr.f32.mxu0 0.0
        %702 = vmatmul.mubr.f32.gmra.mrb[0].mxu0 %v635
        %v703 = vpop.f32.mrb[0].mxu0
        %v704 = vadd.f32 %v632, %v703
        %v705 = vpop.f32.mrb[0].mxu0
        %706 = vdwg.mxu0
        %v707 = vld [vmem:[%s6] sm:$0xff]
        %710 = vrot.lane.b32.xlu0 %v367, 126
        %v711 = vpop.permute.xlu0 %710
        %712 = vrot.lane.b32.xlu0 %v368, 126
        %v713 = vpop.permute.xlu0 %712
        %v714 = vsel %vm384, %v711, %v713
        %v717 = vsel %vm387, %v707, 0
        %719 = vmatprep.subr.mxu0 0.0
        %720 = vmatpush1.msra.mxu0 %v714
        %721 = vmatprep.subr.mxu0 0.0
        %722 = vmatpush1.msra.mxu0 0.0
        %723 = vmatprep.subr.mxu0 0.0
        %724 = vmatpush1.msra.mxu0 0.0
        %725 = vmatprep.subr.mxu0 0.0
        %726 = vmatpush1.msra.mxu0 0.0
        %727 = vmatprep.subr.mxu0 0.0
        %728 = vmatpush1.msra.mxu0 0.0
        %729 = vmatprep.subr.mxu0 0.0
        %730 = vmatpush1.msra.mxu0 0.0
        %731 = vmatprep.subr.mxu0 0.0
        %732 = vmatpush1.msra.mxu0 0.0
        %733 = vmatprep.subr.mxu0 0.0
        %734 = vmatpush1.msra.mxu0 0.0
        %735 = vmatprep.subr.mxu0 0.0
        %736 = vmatpush1.msra.mxu0 0.0
        %737 = vmatprep.subr.mxu0 0.0
        %738 = vmatpush1.msra.mxu0 0.0
        %739 = vmatprep.subr.mxu0 0.0
        %740 = vmatpush1.msra.mxu0 0.0
        %741 = vmatprep.subr.mxu0 0.0
        %742 = vmatpush1.msra.mxu0 0.0
        %743 = vmatprep.subr.mxu0 0.0
        %744 = vmatpush1.msra.mxu0 0.0
        %745 = vmatprep.subr.mxu0 0.0
        %746 = vmatpush1.msra.mxu0 0.0
        %747 = vmatprep.subr.mxu0 0.0
        %748 = vmatpush1.msra.mxu0 0.0
        %749 = vmatprep.subr.mxu0 0.0
        %750 = vmatpush1.msra.mxu0 0.0
        %751 = vmatprep.subr.mxu0 0.0
        %752 = vmatpush1.msra.mxu0 0.0
        %753 = vmatprep.subr.mxu0 0.0
        %754 = vmatpush1.msra.mxu0 0.0
        %755 = vmatprep.subr.mxu0 0.0
        %756 = vmatpush1.msra.mxu0 0.0
        %757 = vmatprep.subr.mxu0 0.0
        %758 = vmatpush1.msra.mxu0 0.0
        %759 = vmatprep.subr.mxu0 0.0
        %760 = vmatpush1.msra.mxu0 0.0
        %761 = vmatprep.subr.mxu0 0.0
        %762 = vmatpush1.msra.mxu0 0.0
        %763 = vmatprep.subr.mxu0 0.0
        %764 = vmatpush1.msra.mxu0 0.0
        %765 = vmatprep.subr.mxu0 0.0
        %766 = vmatpush1.msra.mxu0 0.0
        %767 = vmatprep.subr.mxu0 0.0
        %768 = vmatpush1.msra.mxu0 0.0
        %769 = vmatprep.subr.mxu0 0.0
        %770 = vmatpush1.msra.mxu0 0.0
        %771 = vmatprep.subr.mxu0 0.0
        %772 = vmatpush1.msra.mxu0 0.0
        %773 = vmatprep.subr.mxu0 0.0
        %774 = vmatpush1.msra.mxu0 0.0
        %775 = vmatprep.subr.mxu0 0.0
        %776 = vmatpush1.msra.mxu0 0.0
        %777 = vmatprep.subr.mxu0 0.0
        %778 = vmatpush1.msra.mxu0 0.0
        %779 = vmatprep.subr.mxu0 0.0
        %780 = vmatpush1.msra.mxu0 0.0
        %781 = vmatprep.subr.mxu0 0.0
        %782 = vmatpush1.msra.mxu0 0.0
        %783 = vmatprep.mubr.f32.mxu0 0.0
        %784 = vmatmul.mubr.f32.gmra.mrb[0].mxu0 %v717
        %v785 = vpop.f32.mrb[0].mxu0
        %v786 = vadd.f32 0.0, %v785
        %v787 = vpop.f32.mrb[0].mxu0
        %788 = vdwg.mxu0
        %v789 = vadd.f32 %v704, %v786
        %v790 = vld [vmem:[%s7] sm:$0xff]
        %792 = vset.pattern.permute.xlu0 0
        %793 = vperm.xlu0 %792, %v790
        %v794 = vpop.permute.xlu0 %793
        %v796 = vadd.f32 %v789, %v794
        %797 = vst [vmem:[%s348] sm:$0xff] %v796
        %s798 = sand.u32 %s228, 1
        %s799 = scalar_lea.sflag [#allocation3], %s798
        %s800 = sand.u32 %s228, 1
        %s801 = smul.addr %s800, 8
        %s802 = scalar_lea.vmem [#allocation2], %s801
        // Predicated region
        $region53: #{residual_stack_forward.1} parent=51 // pred_check
          %p803 = pneg %p238
        $region54: #{residual_stack_forward.1} parent=51 // pred_check_branch
          %805 = sbr.rel (%p803) target = $region56
        $region55: #{residual_stack_forward.1} parent=51 // pred_region
          %s807 = ssub.s32 128, 128
          %808 = vsyncadd %s799, %s807
          %s809 = sadd.s32 %s27, %s26
          %s810 = smul.addr %s809, 128
          %s811 = scalar_lea.hbm %s8, %s810
          %s813 = sshll.u32 %s802, 4
          %s814 = int_to_ptr.vmem [resolvable:$true] %s813
          %816 = dma.vmem_to_hbm [thread:$0]  %s814, 128, %s811, %s799
        $region56: #{residual_stack_forward.1} parent=51 // pred_fallthru
          _
      $region52: #{residual_stack_forward.1} parent=5 // pred_fallthru
        _
      %p817 = scmp.le.s32.totalorder 2, %s17
      // Predicated region
      $region57: #{residual_stack_forward.1} parent=5 // pred_check
        %p818 = pneg %p817
      $region58: #{residual_stack_forward.1} parent=5 // pred_check_branch
        %820 = sbr.rel (%p818) target = $region60
      $region59: #{residual_stack_forward.1} parent=5 // pred_region
        %s821 = ssub.s32 %s17, 2
        // Predicated region
        $region61: #{residual_stack_forward.1} parent=59 // pred_check
          %p822 = pneg %p244
        $region62: #{residual_stack_forward.1} parent=59 // pred_check_branch
          %824 = sbr.rel (%p822) target = $region64
        $region63: #{residual_stack_forward.1} parent=59 // pred_region
          %s825 = sand.u32 %s229, 1
          %s826 = scalar_lea.sflag [#allocation3], %s825
          %s827 = sand.u32 %s229, 1
          %s828 = smul.addr %s827, 8
          %s829 = scalar_lea.vmem [#allocation2], %s828
          %830 = dma.done %s826, 128
        $region64: #{residual_stack_forward.1} parent=59 // pred_fallthru
          _
      $region60: #{residual_stack_forward.1} parent=5 // pred_fallthru
        _
    $region6: #{residual_stack_forward.1} parent=1 // loop_footer
      %s21 = sadd.s32 1, %s17
    $region7: #{residual_stack_forward.1} parent=1 // loop_footer_branch
      %16 = sbr.rel target = $region3
    $region8: #{residual_stack_forward.1} parent=1 // loop_exit
      _
    %831 = vsyncpa [#allocation3], 1
    %s832 = scalar_lea.sflag [#allocation3], 1
    %833 = vsyncpa %s832, 1

</llo_original>
